<compile_context>
chip_gen: v7x
topology: tpu7x:2x2x1
jax: 0.10.0
libtpu: 0.0.40
codegen_flags: <defaults>
</compile_context>

<pallas_src>
import jax
import jax.numpy as jnp
import numpy as np
from jax.experimental import pallas as pl
from jax.experimental.pallas import tpu as pltpu

B0 = -10.0
LB = 1e-05
NR = 4
NS = 5
UB = 10.0

_R = 8       # padded sublane extent for NR / NS
_LANE = 128  # lane tile = samples per grid step


def _crnn_kernel(w_ref, wb_ref, x_ref, o_ref):
    # w_ref  : (16, 8)   rows 0:8  = padded w_in.T (NR x NS)
    #                    rows 8:16 = padded w_out  (NS x NR)
    # wb_ref : (8, 128)  padded w_b broadcast across all lanes (NR real rows)
    # x_ref  : (8, 128)  one batch tile: sublanes = species (NS real),
    #                    lanes = independent samples (pad value 1.0)
    # o_ref  : (8, 128)  output tile (NS real rows)
    wit = w_ref[0:_R, :]            # (8, 8)
    wout = w_ref[_R:2 * _R, :]      # (8, 8)
    logx = jnp.log(jnp.clip(x_ref[...], LB, UB))                     # VPU/EUP
    h = jnp.dot(wit, logx, preferred_element_type=jnp.float32)       # MXU
    e = jnp.exp(h + wb_ref[...])                                     # EUP
    o_ref[...] = jnp.dot(wout, e, preferred_element_type=jnp.float32)  # MXU


def _pack_weights(p):
    """One-time parameter unpacking (_p2vec) into TPU-friendly tiles."""
    p = p.astype(jnp.float32)
    w_b = p[:NR] + B0                        # (NR,)
    w_out = p[NR:].reshape(NR, NS).T         # (NS, NR)
    w_in_T = jnp.clip(-w_out, 0.0, 2.5).T    # (NR, NS)

    w_pad = jnp.zeros((2 * _R, _R), jnp.float32)
    w_pad = w_pad.at[:NR, :NS].set(w_in_T)
    w_pad = w_pad.at[_R:_R + NS, :NR].set(w_out)
    wb_pad = jnp.zeros((_R, _LANE), jnp.float32).at[:NR, :].set(w_b[:, None])
    return w_pad, wb_pad


def crnn_forward(p, x):
    """p: (NR*(NS+1),) params. x: (NS,) single sample or (NS, B) batch of
    B independent samples (columns). Returns (NS,) or (NS, B) f32."""
    x = jnp.asarray(x, jnp.float32)
    squeeze = x.ndim == 1
    if squeeze:
        x = x[:, None]
    B = x.shape[1]
    nb = pl.cdiv(B, _LANE)
    Bp = nb * _LANE

    w_pad, wb_pad = _pack_weights(p)

    # Pad with 1.0 so log(1) = 0 is inert; unused trailing lanes are sliced off.
    x_pad = jnp.ones((_R, Bp), jnp.float32).at[:NS, :B].set(x)

    out_pad = pl.pallas_call(
        _crnn_kernel,
        out_shape=jax.ShapeDtypeStruct((_R, Bp), jnp.float32),
        grid=(nb,),
        in_specs=[
            pl.BlockSpec((2 * _R, _R), lambda b: (0, 0)),   # weights, resident
            pl.BlockSpec((_R, _LANE), lambda b: (0, 0)),    # bias, resident
            pl.BlockSpec((_R, _LANE), lambda b: (0, b)),    # batch tile
        ],
        out_specs=pl.BlockSpec((_R, _LANE), lambda b: (0, b)),
        compiler_params=pltpu.CompilerParams(
            dimension_semantics=("parallel",)),
    )(w_pad, wb_pad, x_pad)

    out = out_pad[:NS, :B]
    return out[:, 0] if squeeze else out


def _crnn_reference(p, x):
    """Pure-JAX reference mirroring the PyTorch forward per column."""
    p = p.astype(jnp.float32)
    w_b = p[:NR] + B0
    w_out = p[NR:].reshape(NR, NS).T
    w_in = jnp.clip(-w_out, 0.0, 2.5)
    h = w_in.T @ jnp.log(jnp.clip(x, LB, UB))
    if x.ndim == 1:
        return w_out @ jnp.exp(h + w_b)
    return w_out @ jnp.exp(h + w_b[:, None])


if __name__ == "__main__":
    key = jax.random.PRNGKey(0)
    kp, kx, k1 = jax.random.split(key, 3)

    # Deterministic parameters (same shape as torch.randn(NR*(NS+1)) * 0.1).
    p = jax.random.normal(kp, (NR * (NS + 1),), dtype=jnp.float32) * 0.1

    # Lane-batched path: 256 samples -> 2 grid tiles of 128 lanes each.
    B = 256
    xb = jax.random.uniform(kx, (NS, B), dtype=jnp.float32,
                            minval=0.0, maxval=12.0)
    out_b = crnn_forward(p, xb)
    jax.block_until_ready(out_b)
    np.testing.assert_allclose(np.asarray(out_b),
                               np.asarray(_crnn_reference(p, xb)),
                               rtol=2e-5, atol=1e-6)

    # Single 1-D sample (matches the PyTorch module's x exactly).
    x1 = jax.random.uniform(k1, (NS,), dtype=jnp.float32,
                            minval=0.0, maxval=12.0)
    out_1 = crnn_forward(p, x1)
    jax.block_until_ready(out_1)
    np.testing.assert_allclose(np.asarray(out_1),
                               np.asarray(_crnn_reference(p, x1)),
                               rtol=2e-5, atol=1e-6)

    print("KERNEL_OK")
</pallas_src>

<mosaic_0001>
module attributes {stable_mosaic.version = 11 : i64} {
  func.func @_crnn_kernel(%arg0: i32, %arg1: memref<16x8xf32, #tpu.memory_space<vmem>>, %arg2: memref<8x128xf32, #tpu.memory_space<vmem>>, %arg3: memref<8x128xf32, #tpu.memory_space<vmem>>, %arg4: memref<8x128xf32, #tpu.memory_space<vmem>>) attributes {dimension_semantics = [#tpu.dimension_semantics<parallel>], iteration_bounds = array<i64: 2>, scalar_prefetch = 0 : i64, scratch_operands = 0 : i64, tpu.core_type = #tpu.core_type<tc>, window_params = [{pipeline_mode = #tpu.pipeline_mode<synchronous>, transform_indices = @transform_0, window_bounds = array<i64: 16, 8>}, {pipeline_mode = #tpu.pipeline_mode<synchronous>, transform_indices = @transform_1, window_bounds = array<i64: 8, 128>}, {transform_indices = @transform_2, window_bounds = array<i64: 8, 128>}, {transform_indices = @transform_3, window_bounds = array<i64: 8, 128>}]} {
    %c0 = arith.constant 0 : index
    %c0_0 = arith.constant 0 : index
    %0 = vector.load %arg1[%c0, %c0_0] : memref<16x8xf32, #tpu.memory_space<vmem>>, vector<8x8xf32>
    %c8 = arith.constant 8 : index
    %c0_1 = arith.constant 0 : index
    %1 = vector.load %arg1[%c8, %c0_1] : memref<16x8xf32, #tpu.memory_space<vmem>>, vector<8x8xf32>
    %c0_2 = arith.constant 0 : index
    %c0_3 = arith.constant 0 : index
    %2 = vector.load %arg3[%c0_2, %c0_3] : memref<8x128xf32, #tpu.memory_space<vmem>>, vector<8x128xf32>
    %cst = arith.constant 9.99999974E-6 : f32
    %cst_4 = arith.constant 1.000000e+01 : f32
    %3 = vector.broadcast %cst : f32 to vector<8x128xf32>
    %4 = arith.maximumf %3, %2 : vector<8x128xf32>
    %5 = vector.broadcast %cst_4 : f32 to vector<8x128xf32>
    %6 = arith.minimumf %5, %4 : vector<8x128xf32>
    %7 = math.log %6 : vector<8x128xf32>
    %cst_5 = arith.constant dense<0.000000e+00> : vector<8x128xf32>
    %8 = tpu.matmul %0, %7, %cst_5 {dimension_numbers = #tpu.dot_dimension_numbers<[1], [0], [0], [1], [0, 0, 1, 1], [], []>} : vector<8x8xf32>, vector<8x128xf32>, vector<8x128xf32> -> vector<8x128xf32>
    %c0_6 = arith.constant 0 : index
    %c0_7 = arith.constant 0 : index
    %9 = vector.load %arg2[%c0_6, %c0_7] : memref<8x128xf32, #tpu.memory_space<vmem>>, vector<8x128xf32>
    %10 = arith.addf %8, %9 : vector<8x128xf32>
    %11 = math.exp %10 : vector<8x128xf32>
    %cst_8 = arith.constant dense<0.000000e+00> : vector<8x128xf32>
    %12 = tpu.matmul %1, %11, %cst_8 {dimension_numbers = #tpu.dot_dimension_numbers<[1], [0], [0], [1], [0, 0, 1, 1], [], []>} : vector<8x8xf32>, vector<8x128xf32>, vector<8x128xf32> -> vector<8x128xf32>
    %c0_9 = arith.constant 0 : index
    %c0_10 = arith.constant 0 : index
    %13 = vector.load %arg4[%c0_9, %c0_10] : memref<8x128xf32, #tpu.memory_space<vmem>>, vector<8x128xf32>
    tpu.vector_store %arg4[%c0_9, %c0_10], %12 {strides = array<i32>} : memref<8x128xf32, #tpu.memory_space<vmem>>, vector<8x128xf32>,
    return
  }
  func.func @transform_0(%arg0: i32) -> (i32, i32) {
    %c0_i32 = arith.constant 0 : i32
    %c0_i32_0 = arith.constant 0 : i32
    %c0_i32_1 = arith.constant 0 : i32
    return %c0_i32, %c0_i32_0 : i32, i32
  }
  func.func @transform_1(%arg0: i32) -> (i32, i32) {
    %c0_i32 = arith.constant 0 : i32
    %c0_i32_0 = arith.constant 0 : i32
    %c0_i32_1 = arith.constant 0 : i32
    return %c0_i32, %c0_i32_0 : i32, i32
  }
  func.func @transform_2(%arg0: i32) -> (i32, i32) {
    %c0_i32 = arith.constant 0 : i32
    %c0_i32_0 = arith.constant 0 : i32
    return %c0_i32, %arg0 : i32, i32
  }
  func.func @transform_3(%arg0: i32) -> (i32, i32) {
    %c0_i32 = arith.constant 0 : i32
    %c0_i32_0 = arith.constant 0 : i32
    return %c0_i32, %arg0 : i32, i32
  }
}

</mosaic_0001>

<llo_original>
// kernel: tpu_custom_call.1
$region0: #{tpu_custom_call.1}
  #allocation0 [shape = 'u32[]', space=smem, size = 0x4, offset = 0x4, fixed_abs, tag = 'smem constant byte address 0x4 - core index']
  #allocation1 [shape = 'u32[144,128]{1,0:T(1,128)}', space=vmem, size = 0x12000, scoped, tag = 'internal scratch']
  %s0 = inlined_call_operand.vmem [shape: f32[16,8], index: 0, kind: input, shape index: {}]
  %s1 = inlined_call_operand.vmem [shape: f32[8,128], index: 1, kind: input, shape index: {}]
  %s2 = inlined_call_operand.vmem [shape: f32[8,256], index: 2, kind: input, shape index: {}]
  %s3 = inlined_call_operand.hbm [shape: f32[8,256], index: 3, kind: output, shape index: {}]
  %s4 = sld [smem:[#allocation0]]
  $region45: #{tpu_custom_call.1} parent=0
    _
  %s6 = ssub.s32 1, %s4
  %s7 = scalar_select 0, %s6, %s4
  $region1: #{tpu_custom_call.1} parent=0
    #allocation2 [shape = 'u8[8192]{0}', space=vmem, size = 0x2000, scoped, tag = 'output window, operand 0']
    #allocation3 [shape = 's32[2]{0}', space=sflag, size = 0x8, scoped, tag = 'scoped memory for tpu_custom_call.1']
    %8 = vsyncpa [#allocation3], 0
    %s9 = scalar_lea.sflag [#allocation3], 1
    %10 = vsyncpa %s9, 0
    loop: start=0, step=1, limit=4
    $region2: #{tpu_custom_call.1} parent=1 // loop_pre_header
      _
    $region3: #{tpu_custom_call.1} parent=1 // loop_header
      %s12 = sphi 0, %s16
      %p13 = scmp.ge.s32.totalorder %s12, 4
      %s20 = sphi 0, %s20
      %s22 = sphi 0, %s20
      %s23 = sphi 0, %s22
      %s37 = sphi 0, %s23
      %s41 = sphi 0, %s41
      %s43 = sphi 0, %s41
      %s44 = sphi 0, %s43
      %s58 = sphi 0, %s44
      %s64 = sphi 0, %s66
      %s67 = sphi 0, %s64
      %s68 = sphi 0, %s67
      %s84 = sphi 0, %s68
      %s90 = sphi 0, %s92
      %s93 = sphi 0, %s90
      %s94 = sphi 0, %s93
      %s110 = sphi 0, %s94
    $region4: #{tpu_custom_call.1} parent=1 // loop_header_branch
      %15 = sbr.rel (%p13) target = $region8
    $region5: #{tpu_custom_call.1} parent=1 // loop_body
      %s17 = ssub.s32 %s12, 1
      %s18 = ssub.s32 %s12, 2
      %s19 = sadd.s32 %s12, 1
      %s21 = sadd.s32 %s20, 1
      %p24 = scmp.eq.s32.totalorder %s12, 1
      %p25 = scmp.ne.s32.totalorder %s20, %s22
      %p26 = scmp.eq.s32.totalorder %s12, 0
      %p27 = por %p25, %p26
      %p28 = scmp.ne.s32.totalorder %s20, %s22
      %p29 = scmp.eq.s32.totalorder %s17, 1
      %p30 = por %p28, %p29
      %p31 = scmp.ne.s32.totalorder %s22, %s23
      %p32 = scmp.eq.s32.totalorder %s17, 0
      %p33 = por %p31, %p32
      %p34 = scmp.ne.s32.totalorder %s22, %s23
      %p35 = scmp.eq.s32.totalorder %s18, 1
      %p36 = por %p34, %p35
      %p38 = scmp.ne.s32.totalorder %s23, %s37
      %p39 = scmp.eq.s32.totalorder %s18, 0
      %p40 = por %p38, %p39
      %s42 = sadd.s32 %s41, 1
      %p45 = scmp.eq.s32.totalorder %s12, 1
      %p46 = scmp.ne.s32.totalorder %s41, %s43
      %p47 = scmp.eq.s32.totalorder %s12, 0
      %p48 = por %p46, %p47
      %p49 = scmp.ne.s32.totalorder %s41, %s43
      %p50 = scmp.eq.s32.totalorder %s17, 1
      %p51 = por %p49, %p50
      %p52 = scmp.ne.s32.totalorder %s43, %s44
      %p53 = scmp.eq.s32.totalorder %s17, 0
      %p54 = por %p52, %p53
      %p55 = scmp.ne.s32.totalorder %s43, %s44
      %p56 = scmp.eq.s32.totalorder %s18, 1
      %p57 = por %p55, %p56
      %p59 = scmp.ne.s32.totalorder %s44, %s58
      %p60 = scmp.eq.s32.totalorder %s18, 0
      %p61 = por %p59, %p60
      %s62 = ssub.s32 %s12, %s19
      %p63 = scmp.eq.s32.totalorder %s62, 0
      %s65 = sadd.s32 %s64, 1
      %s66 = scalar_select %p63, %s64, %s65
      %p69 = pneg %p63
      %p70 = scmp.eq.s32.totalorder %s12, 1
      %p71 = por %p69, %p70
      %p72 = scmp.ne.s32.totalorder %s64, %s67
      %p73 = scmp.eq.s32.totalorder %s12, 0
      %p74 = por %p72, %p73
      %p75 = scmp.ne.s32.totalorder %s64, %s67
      %p76 = scmp.eq.s32.totalorder %s17, 1
      %p77 = por %p75, %p76
      %p78 = scmp.ne.s32.totalorder %s67, %s68
      %p79 = scmp.eq.s32.totalorder %s17, 0
      %p80 = por %p78, %p79
      %p81 = scmp.ne.s32.totalorder %s67, %s68
      %p82 = scmp.eq.s32.totalorder %s18, 1
      %p83 = por %p81, %p82
      %p85 = scmp.ne.s32.totalorder %s68, %s84
      %p86 = scmp.eq.s32.totalorder %s18, 0
      %p87 = por %p85, %p86
      %s88 = ssub.s32 %s12, %s19
      %p89 = scmp.eq.s32.totalorder %s88, 0
      %s91 = sadd.s32 %s90, 1
      %s92 = scalar_select %p89, %s90, %s91
      %p95 = pneg %p89
      %p96 = scmp.eq.s32.totalorder %s12, 1
      %p97 = por %p95, %p96
      %p98 = scmp.ne.s32.totalorder %s90, %s93
      %p99 = scmp.eq.s32.totalorder %s12, 0
      %p100 = por %p98, %p99
      %p101 = scmp.ne.s32.totalorder %s90, %s93
      %p102 = scmp.eq.s32.totalorder %s17, 1
      %p103 = por %p101, %p102
      %p104 = scmp.ne.s32.totalorder %s93, %s94
      %p105 = scmp.eq.s32.totalorder %s17, 0
      %p106 = por %p104, %p105
      %p107 = scmp.ne.s32.totalorder %s93, %s94
      %p108 = scmp.eq.s32.totalorder %s18, 1
      %p109 = por %p107, %p108
      %p111 = scmp.ne.s32.totalorder %s94, %s110
      %p112 = scmp.eq.s32.totalorder %s18, 0
      %p113 = por %p111, %p112
      %p114 = scmp.le.s32.totalorder 1, %s12
      %p115 = scmp.lt.s32.totalorder %s12, 3
      %p116 = pnand %p114, %p115
      %p117 = pneg %p116
      // Predicated region
      $region9: #{tpu_custom_call.1} parent=5 // pred_check
        _
      $region10: #{tpu_custom_call.1} parent=5 // pred_check_branch
        %119 = sbr.rel (%p116) target = $region12
      $region11: #{tpu_custom_call.1} parent=5 // pred_region
        %s120 = ssub.s32 %s12, 1
        // Predicated region
        $region13: #{tpu_custom_call.1} parent=11 // pred_check
          %p121 = pneg %p33
        $region14: #{tpu_custom_call.1} parent=11 // pred_check_branch
          %123 = sbr.rel (%p121) target = $region16
        $region15: #{tpu_custom_call.1} parent=11 // pred_region
          _
        $region16: #{tpu_custom_call.1} parent=11 // pred_fallthru
          _
        // Predicated region
        $region17: #{tpu_custom_call.1} parent=11 // pred_check
          %p124 = pneg %p54
        $region18: #{tpu_custom_call.1} parent=11 // pred_check_branch
          %126 = sbr.rel (%p124) target = $region20
        $region19: #{tpu_custom_call.1} parent=11 // pred_region
          _
        $region20: #{tpu_custom_call.1} parent=11 // pred_fallthru
          _
      $region12: #{tpu_custom_call.1} parent=5 // pred_fallthru
        _
      %p127 = scmp.lt.s32.totalorder %s12, 2
      // Predicated region
      $region21: #{tpu_custom_call.1} parent=5 // pred_check
        %p128 = pneg %p127
      $region22: #{tpu_custom_call.1} parent=5 // pred_check_branch
        %130 = sbr.rel (%p128) target = $region24
      $region23: #{tpu_custom_call.1} parent=5 // pred_region
        // Predicated region
        $region25: #{tpu_custom_call.1} parent=23 // pred_check
          %p131 = pneg %p74
        $region26: #{tpu_custom_call.1} parent=23 // pred_check_branch
          %133 = sbr.rel (%p131) target = $region28
        $region27: #{tpu_custom_call.1} parent=23 // pred_region
          %p134 = scmp.lt.s32.totalorder %s12, 1
          %s135 = scalar_select %p134, %s12, 1
          %s136 = smul.addr %s135, 8
          %s137 = scalar_lea.vmem %s2, %s136
        $region28: #{tpu_custom_call.1} parent=23 // pred_fallthru
          _
      $region24: #{tpu_custom_call.1} parent=5 // pred_fallthru
        _
      %p138 = scmp.le.s32.totalorder 1, %s12
      %p139 = scmp.lt.s32.totalorder %s12, 3
      %p140 = pnand %p138, %p139
      %p141 = pneg %p140
      // Predicated region
      $region29: #{tpu_custom_call.1} parent=5 // pred_check
        _
      $region30: #{tpu_custom_call.1} parent=5 // pred_check_branch
        %143 = sbr.rel (%p140) target = $region32
      $region31: #{tpu_custom_call.1} parent=5 // pred_region
        %s144 = ssub.s32 %s12, 1
        %p145 = pneg %p33
        %p146 = pneg %p30
        %p147 = pneg %p54
        %p148 = pneg %p51
        %p149 = scmp.lt.s32.totalorder %s17, 1
        %s150 = scalar_select %p149, %s17, 1
        %s151 = smul.addr %s150, 8
        %s152 = scalar_lea.vmem %s2, %s151
        %p153 = pneg %p80
        %p154 = pneg %p77
        %p155 = pneg %p106
        %p156 = pneg %p103
        %s157 = sand.u32 %s93, 1
        %s158 = scalar_lea.sflag [#allocation3], %s157
        %s159 = sand.u32 %s93, 1
        %s160 = smul.addr %s159, 8
        %s161 = scalar_lea.vmem [#allocation2], %s160
        %p162 = scmp.lt.s32.totalorder %s17, 1
        %s163 = scalar_select %p162, %s17, 1
        %s164 = smul.addr %s163, 8
        %s165 = scalar_lea.vmem %s2, %s164
        %v166 = vld [vmem:[%s0] sm:$0xff]
        %v167 = vld [vmem:[%s0 + $0x8] sm:$0xff]
        %v168 = vld [vmem:[%s165] sm:$0xff]
        %v169 = vmax.f32 %v168, 1e-05
        %v170 = vmin.f32 %v169, 10.0
        %v171 = vlog2.pop %v170
        %v172 = vmul.f32 %v171, 0.6931472
        %v173 = vld [vmem:[%s1] sm:$0xff]
        %vm174 = vcmask 64512
        %v176 = vsel %vm174, %v166, 0
        %178 = vmatprep.subr.mxu0 0.0
        %179 = vmatpush1.msra.mxu0 %v172
        %180 = vmatprep.subr.mxu0 0.0
        %181 = vmatpush1.msra.mxu0 0.0
        %182 = vmatprep.subr.mxu0 0.0
        %183 = vmatpush1.msra.mxu0 0.0
        %184 = vmatprep.subr.mxu0 0.0
        %185 = vmatpush1.msra.mxu0 0.0
        %186 = vmatprep.subr.mxu0 0.0
        %187 = vmatpush1.msra.mxu0 0.0
        %188 = vmatprep.subr.mxu0 0.0
        %189 = vmatpush1.msra.mxu0 0.0
        %190 = vmatprep.subr.mxu0 0.0
        %191 = vmatpush1.msra.mxu0 0.0
        %192 = vmatprep.subr.mxu0 0.0
        %193 = vmatpush1.msra.mxu0 0.0
        %194 = vmatprep.subr.mxu0 0.0
        %195 = vmatpush1.msra.mxu0 0.0
        %196 = vmatprep.subr.mxu0 0.0
        %197 = vmatpush1.msra.mxu0 0.0
        %198 = vmatprep.subr.mxu0 0.0
        %199 = vmatpush1.msra.mxu0 0.0
        %200 = vmatprep.subr.mxu0 0.0
        %201 = vmatpush1.msra.mxu0 0.0
        %202 = vmatprep.subr.mxu0 0.0
        %203 = vmatpush1.msra.mxu0 0.0
        %204 = vmatprep.subr.mxu0 0.0
        %205 = vmatpush1.msra.mxu0 0.0
        %206 = vmatprep.subr.mxu0 0.0
        %207 = vmatpush1.msra.mxu0 0.0
        %208 = vmatprep.subr.mxu0 0.0
        %209 = vmatpush1.msra.mxu0 0.0
        %210 = vmatprep.subr.mxu0 0.0
        %211 = vmatpush1.msra.mxu0 0.0
        %212 = vmatprep.subr.mxu0 0.0
        %213 = vmatpush1.msra.mxu0 0.0
        %214 = vmatprep.subr.mxu0 0.0
        %215 = vmatpush1.msra.mxu0 0.0
        %216 = vmatprep.subr.mxu0 0.0
        %217 = vmatpush1.msra.mxu0 0.0
        %218 = vmatprep.subr.mxu0 0.0
        %219 = vmatpush1.msra.mxu0 0.0
        %220 = vmatprep.subr.mxu0 0.0
        %221 = vmatpush1.msra.mxu0 0.0
        %222 = vmatprep.subr.mxu0 0.0
        %223 = vmatpush1.msra.mxu0 0.0
        %224 = vmatprep.subr.mxu0 0.0
        %225 = vmatpush1.msra.mxu0 0.0
        %226 = vmatprep.subr.mxu0 0.0
        %227 = vmatpush1.msra.mxu0 0.0
        %228 = vmatprep.subr.mxu0 0.0
        %229 = vmatpush1.msra.mxu0 0.0
        %230 = vmatprep.subr.mxu0 0.0
        %231 = vmatpush1.msra.mxu0 0.0
        %232 = vmatprep.subr.mxu0 0.0
        %233 = vmatpush1.msra.mxu0 0.0
        %234 = vmatprep.subr.mxu0 0.0
        %235 = vmatpush1.msra.mxu0 0.0
        %236 = vmatprep.subr.mxu0 0.0
        %237 = vmatpush1.msra.mxu0 0.0
        %238 = vmatprep.subr.mxu0 0.0
        %239 = vmatpush1.msra.mxu0 0.0
        %240 = vmatprep.subr.mxu0 0.0
        %241 = vmatpush1.msra.mxu0 0.0
        %242 = vmatprep.mubr.f32.mxu0 0.0
        %243 = vmatmul.mubr.f32.gmra.mrb[0].mxu0 %v176
        %v244 = vpop.f32.mrb[0].mxu0
        %v245 = vadd.f32 %v173, %v244
        %v246 = vpop.f32.mrb[0].mxu0
        %247 = vdwg.mxu0
        %v248 = vmul.f32 %v245, 1.442695
        %v249 = vpow.pop %v248
        %v251 = vsel %vm174, %v167, 0
        %253 = vmatprep.subr.mxu0 0.0
        %254 = vmatpush1.msra.mxu0 %v249
        %255 = vmatprep.subr.mxu0 0.0
        %256 = vmatpush1.msra.mxu0 0.0
        %257 = vmatprep.subr.mxu0 0.0
        %258 = vmatpush1.msra.mxu0 0.0
        %259 = vmatprep.subr.mxu0 0.0
        %260 = vmatpush1.msra.mxu0 0.0
        %261 = vmatprep.subr.mxu0 0.0
        %262 = vmatpush1.msra.mxu0 0.0
        %263 = vmatprep.subr.mxu0 0.0
        %264 = vmatpush1.msra.mxu0 0.0
        %265 = vmatprep.subr.mxu0 0.0
        %266 = vmatpush1.msra.mxu0 0.0
        %267 = vmatprep.subr.mxu0 0.0
        %268 = vmatpush1.msra.mxu0 0.0
        %269 = vmatprep.subr.mxu0 0.0
        %270 = vmatpush1.msra.mxu0 0.0
        %271 = vmatprep.subr.mxu0 0.0
        %272 = vmatpush1.msra.mxu0 0.0
        %273 = vmatprep.subr.mxu0 0.0
        %274 = vmatpush1.msra.mxu0 0.0
        %275 = vmatprep.subr.mxu0 0.0
        %276 = vmatpush1.msra.mxu0 0.0
        %277 = vmatprep.subr.mxu0 0.0
        %278 = vmatpush1.msra.mxu0 0.0
        %279 = vmatprep.subr.mxu0 0.0
        %280 = vmatpush1.msra.mxu0 0.0
        %281 = vmatprep.subr.mxu0 0.0
        %282 = vmatpush1.msra.mxu0 0.0
        %283 = vmatprep.subr.mxu0 0.0
        %284 = vmatpush1.msra.mxu0 0.0
        %285 = vmatprep.subr.mxu0 0.0
        %286 = vmatpush1.msra.mxu0 0.0
        %287 = vmatprep.subr.mxu0 0.0
        %288 = vmatpush1.msra.mxu0 0.0
        %289 = vmatprep.subr.mxu0 0.0
        %290 = vmatpush1.msra.mxu0 0.0
        %291 = vmatprep.subr.mxu0 0.0
        %292 = vmatpush1.msra.mxu0 0.0
        %293 = vmatprep.subr.mxu0 0.0
        %294 = vmatpush1.msra.mxu0 0.0
        %295 = vmatprep.subr.mxu0 0.0
        %296 = vmatpush1.msra.mxu0 0.0
        %297 = vmatprep.subr.mxu0 0.0
        %298 = vmatpush1.msra.mxu0 0.0
        %299 = vmatprep.subr.mxu0 0.0
        %300 = vmatpush1.msra.mxu0 0.0
        %301 = vmatprep.subr.mxu0 0.0
        %302 = vmatpush1.msra.mxu0 0.0
        %303 = vmatprep.subr.mxu0 0.0
        %304 = vmatpush1.msra.mxu0 0.0
        %305 = vmatprep.subr.mxu0 0.0
        %306 = vmatpush1.msra.mxu0 0.0
        %307 = vmatprep.subr.mxu0 0.0
        %308 = vmatpush1.msra.mxu0 0.0
        %309 = vmatprep.subr.mxu0 0.0
        %310 = vmatpush1.msra.mxu0 0.0
        %311 = vmatprep.subr.mxu0 0.0
        %312 = vmatpush1.msra.mxu0 0.0
        %313 = vmatprep.subr.mxu0 0.0
        %314 = vmatpush1.msra.mxu0 0.0
        %315 = vmatprep.subr.mxu0 0.0
        %316 = vmatpush1.msra.mxu0 0.0
        %317 = vmatprep.mubr.f32.mxu0 0.0
        %318 = vmatmul.mubr.f32.gmra.mrb[0].mxu0 %v251
        %v319 = vpop.f32.mrb[0].mxu0
        %v320 = vadd.f32 0.0, %v319
        %v321 = vpop.f32.mrb[0].mxu0
        %322 = vdwg.mxu0
        %323 = vst [vmem:[%s161] sm:$0xff] %v320
        %s324 = sand.u32 %s93, 1
        %s325 = scalar_lea.sflag [#allocation3], %s324
        %s326 = sand.u32 %s93, 1
        %s327 = smul.addr %s326, 8
        %s328 = scalar_lea.vmem [#allocation2], %s327
        // Predicated region
        $region33: #{tpu_custom_call.1} parent=31 // pred_check
          %p329 = pneg %p103
        $region34: #{tpu_custom_call.1} parent=31 // pred_check_branch
          %331 = sbr.rel (%p329) target = $region36
        $region35: #{tpu_custom_call.1} parent=31 // pred_region
          %s333 = ssub.s32 128, 128
          %334 = vsyncadd %s325, %s333
          %s335 = smul.addr %s17, 128
          %s336 = scalar_lea.hbm %s3, %s335
          %s338 = sshll.u32 %s328, 4
          %s339 = int_to_ptr.vmem [resolvable:$true] %s338
          %341 = dma.vmem_to_hbm [thread:$0]  %s339, 128, %s336, %s325
        $region36: #{tpu_custom_call.1} parent=31 // pred_fallthru
          _
      $region32: #{tpu_custom_call.1} parent=5 // pred_fallthru
        _
      %p342 = scmp.le.s32.totalorder 2, %s12
      // Predicated region
      $region37: #{tpu_custom_call.1} parent=5 // pred_check
        %p343 = pneg %p342
      $region38: #{tpu_custom_call.1} parent=5 // pred_check_branch
        %345 = sbr.rel (%p343) target = $region40
      $region39: #{tpu_custom_call.1} parent=5 // pred_region
        %s346 = ssub.s32 %s12, 2
        // Predicated region
        $region41: #{tpu_custom_call.1} parent=39 // pred_check
          %p347 = pneg %p109
        $region42: #{tpu_custom_call.1} parent=39 // pred_check_branch
          %349 = sbr.rel (%p347) target = $region44
        $region43: #{tpu_custom_call.1} parent=39 // pred_region
          %s350 = sand.u32 %s94, 1
          %s351 = scalar_lea.sflag [#allocation3], %s350
          %s352 = sand.u32 %s94, 1
          %s353 = smul.addr %s352, 8
          %s354 = scalar_lea.vmem [#allocation2], %s353
          %355 = dma.done %s351, 128
        $region44: #{tpu_custom_call.1} parent=39 // pred_fallthru
          _
      $region40: #{tpu_custom_call.1} parent=5 // pred_fallthru
        _
    $region6: #{tpu_custom_call.1} parent=1 // loop_footer
      %s16 = sadd.s32 1, %s12
    $region7: #{tpu_custom_call.1} parent=1 // loop_footer_branch
      %11 = sbr.rel target = $region3
    $region8: #{tpu_custom_call.1} parent=1 // loop_exit
      _
    %356 = vsyncpa [#allocation3], 1
    %s357 = scalar_lea.sflag [#allocation3], 1
    %358 = vsyncpa %s357, 1

</llo_original>
